<compile_context>
chip_gen: v7x
topology: tpu7x:2x2x1
jax: 0.10.0
libtpu: 0.0.40
codegen_flags: <defaults>
</compile_context>

<pallas_src>
import math

import jax
import jax.numpy as jnp
from jax.experimental import pallas as pl
from jax.experimental.pallas import tpu as pltpu


# ----------------------------------------------------------------------------
# Pallas kernel: out = relu(X @ W + bias)   (BN scale pre-folded into W)
# ----------------------------------------------------------------------------
def _matmul_bias_relu_kernel(x_ref, w_ref, bias_ref, o_ref, acc_ref):
    @pl.when(pl.program_id(2) == 0)
    def _():
        acc_ref[...] = jnp.zeros_like(acc_ref)

    acc_ref[...] += jnp.dot(x_ref[...], w_ref[...],
                            preferred_element_type=jnp.float32)

    @pl.when(pl.program_id(2) == pl.num_programs(2) - 1)
    def _():
        y = acc_ref[...] + bias_ref[...]
        o_ref[...] = jnp.maximum(y, 0.0).astype(o_ref.dtype)


def _round_up(x, m):
    return ((x + m - 1) // m) * m


def _largest_div_tile(n, max_tile, granule=128):
    """Largest multiple of `granule` <= max_tile that divides n (n % granule == 0)."""
    c = min(max_tile, n)
    c = (c // granule) * granule
    while c > granule and n % c != 0:
        c -= granule
    return max(c, granule)


def _pick_tm(M):
    # Prefer >= 2 M-tiles so the grid can shard across v7x's two TensorCores.
    for c in (512, 256, 128):
        if M % c == 0 and M // c >= 2:
            return c, M
    for c in (512, 256, 128):
        if M % c == 0:
            return c, M
    return 128, _round_up(M, 128)  # ragged fallback (pads, slices after)


def fused_matmul_bn_relu(x2d, w2d, bn_scale, bn_bias):
    """relu((x2d @ w2d) * bn_scale + bn_bias); scale folded into the weights.

    x2d: (M, K) f32, w2d: (K, N) f32, bn_scale/bn_bias: (N,) f32 -> (M, N) f32.
    """
    M, K = x2d.shape
    K2, N = w2d.shape
    assert K == K2, (K, K2)

    # Fold BN scale into the weight matrix (one host-side multiply).
    w2d = w2d * bn_scale[None, :]

    # Pad K and N to the 128-lane granule: vreg-aligned contraction, lane-dense
    # (unmasked) output stores. Zero padding is exact for matmul + bias.
    Kp = _round_up(K, 128)
    Np = _round_up(N, 128)
    if Kp != K:
        x2d = jnp.pad(x2d, ((0, 0), (0, Kp - K)))
        w2d = jnp.pad(w2d, ((0, Kp - K), (0, 0)))
    if Np != N:
        w2d = jnp.pad(w2d, ((0, 0), (0, Np - N)))
        bn_bias = jnp.pad(bn_bias, (0, Np - N))

    tm, Mp = _pick_tm(M)
    if Mp != M:
        x2d = jnp.pad(x2d, ((0, Mp - M), (0, 0)))
    tn = _largest_div_tile(Np, 256)
    tk = _largest_div_tile(Kp, 512)

    # bf16 MXU datapath, f32 accumulate.
    x_bf = x2d.astype(jnp.bfloat16)
    w_bf = w2d.astype(jnp.bfloat16)
    bias2 = bn_bias.reshape(1, Np).astype(jnp.float32)

    grid = (Mp // tm, Np // tn, Kp // tk)

    out = pl.pallas_call(
        _matmul_bias_relu_kernel,
        out_shape=jax.ShapeDtypeStruct((Mp, Np), jnp.float32),
        grid_spec=pltpu.PrefetchScalarGridSpec(
            num_scalar_prefetch=0,
            grid=grid,
            in_specs=[
                pl.BlockSpec((tm, tk), lambda i, j, k: (i, k)),   # X tile
                pl.BlockSpec((tk, tn), lambda i, j, k: (k, j)),   # W tile
                pl.BlockSpec((1, tn), lambda i, j, k: (0, j)),    # folded BN bias
            ],
            out_specs=pl.BlockSpec((tm, tn), lambda i, j, k: (i, j)),
            scratch_shapes=[pltpu.VMEM((tm, tn), jnp.float32)],
        ),
        compiler_params=pltpu.CompilerParams(
            dimension_semantics=("parallel", "parallel", "arbitrary"),
            vmem_limit_bytes=32 * 1024 * 1024,
        ),
    )(x_bf, w_bf, bias2)
    return out[:M, :N]


# ----------------------------------------------------------------------------
# Conv (im2col) -> fused Pallas matmul+BN+ReLU
# ----------------------------------------------------------------------------
def _im2col(x_nhwc, ksize, stride, padding):
    B, H, W, Cin = x_nhwc.shape
    Hout = (H + 2 * padding - ksize) // stride + 1
    Wout = (W + 2 * padding - ksize) // stride + 1
    xp = jnp.pad(x_nhwc, ((0, 0), (padding, padding), (padding, padding), (0, 0)))
    cols = []
    for ki in range(ksize):
        for kj in range(ksize):
            cols.append(xp[:, ki:ki + (Hout - 1) * stride + 1:stride,
                              kj:kj + (Wout - 1) * stride + 1:stride, :])
    xcol = jnp.concatenate(cols, axis=-1).reshape(
        B * Hout * Wout, ksize * ksize * Cin)
    return xcol, Hout, Wout


def conv_bn_relu(x_nhwc, weight, bn_scale, bn_bias, stride, padding):
    """weight: (Cout, Cin, kh, kw) PyTorch OIHW; x_nhwc: (B, H, W, Cin)."""
    B = x_nhwc.shape[0]
    Cout, Cin, kh, kw = weight.shape
    xcol, Hout, Wout = _im2col(x_nhwc, kh, stride, padding)
    # Tap ordering (ki, kj, cin) matches the im2col concat order above.
    w2 = jnp.transpose(weight, (2, 3, 1, 0)).reshape(kh * kw * Cin, Cout)
    y = fused_matmul_bn_relu(xcol, w2, bn_scale, bn_bias)
    return y.reshape(B, Hout, Wout, Cout)


# ----------------------------------------------------------------------------
# module_init forward (inference-mode BN)
# ----------------------------------------------------------------------------
def module_init_forward(x_nchw, params, stride=2):
    x = jnp.transpose(x_nchw, (0, 2, 3, 1))      # NCHW -> NHWC (channels on lanes)
    w1, s1, b1 = params["conv1"]                 # (32, inplanes, 3, 3)
    y = conv_bn_relu(x, w1, s1, b1, stride=stride, padding=stride // 2)
    w2, s2, b2 = params["conv2"]                 # (planes, 32, 3, 3)
    y = conv_bn_relu(y, w2, s2, b2, stride=1, padding=1)
    return jnp.transpose(y, (0, 3, 1, 2))        # NHWC -> NCHW


# ----------------------------------------------------------------------------
# Deterministic parameter initialization (fresh BN -> scale/bias fold)
# ----------------------------------------------------------------------------
def _kaiming_normal(key, shape):
    fan_in = shape[1] * shape[2] * shape[3]
    std = math.sqrt(2.0 / fan_in)
    return jax.random.normal(key, shape, dtype=jnp.float32) * std


def _bn_fold(c, eps=1e-5):
    # gamma=1, beta=0, running_mean=0, running_var=1 -> scale=1/sqrt(1+eps), bias=0
    scale = jnp.full((c,), 1.0 / math.sqrt(1.0 + eps), dtype=jnp.float32)
    bias = jnp.zeros((c,), dtype=jnp.float32)
    return scale, bias


def init_params(key, inplanes, planes):
    k1, k2 = jax.random.split(key)
    return {
        "conv1": (_kaiming_normal(k1, (32, inplanes, 3, 3)), *_bn_fold(32)),
        "conv2": (_kaiming_normal(k2, (planes, 32, 3, 3)), *_bn_fold(planes)),
    }


# ----------------------------------------------------------------------------
# Pure-JAX f32 reference (for tolerance check against the bf16 kernel path)
# ----------------------------------------------------------------------------
def module_init_reference(x_nchw, params, stride=2):
    def conv(x, w, s, pad):
        return jax.lax.conv_general_dilated(
            x, w, window_strides=(s, s), padding=((pad, pad), (pad, pad)),
            dimension_numbers=("NCHW", "OIHW", "NCHW"))

    w1, sc1, b1 = params["conv1"]
    y = jnp.maximum(conv(x_nchw, w1, stride, stride // 2)
                    * sc1[None, :, None, None] + b1[None, :, None, None], 0.0)
    w2, sc2, b2 = params["conv2"]
    y = jnp.maximum(conv(y, w2, 1, 1)
                    * sc2[None, :, None, None] + b2[None, :, None, None], 0.0)
    return y


if __name__ == "__main__":
    inplanes, planes, stride = 4, 16, 2
    B, H, W = 2, 16, 16

    key = jax.random.PRNGKey(0)
    kx, kp = jax.random.split(key)
    x = jax.random.normal(kx, (B, inplanes, H, W), dtype=jnp.float32)  # NCHW
    params = init_params(kp, inplanes, planes)

    out = jax.jit(module_init_forward)(x, params)
    out = jax.block_until_ready(out)

    Hout = (H + 2 * (stride // 2) - 3) // stride + 1
    Wout = (W + 2 * (stride // 2) - 3) // stride + 1
    assert out.shape == (B, planes, Hout, Wout), out.shape
    assert out.dtype == jnp.float32
    assert bool(jnp.all(jnp.isfinite(out)))
    assert bool(jnp.all(out >= 0.0))  # ReLU output

    # bf16 MXU inputs with f32 accumulate -> loose tolerance vs f32 reference.
    ref = module_init_reference(x, params, stride=stride)
    assert bool(jnp.allclose(out, ref, rtol=5e-2, atol=5e-2)), \
        float(jnp.max(jnp.abs(out - ref)))

    print("KERNEL_OK")
</pallas_src>

<mosaic_0001>
module attributes {stable_mosaic.version = 11 : i64} {
  func.func @_matmul_bias_relu_kernel(%arg0: i32, %arg1: i32, %arg2: i32, %arg3: memref<128x128xbf16, #tpu.memory_space<vmem>>, %arg4: memref<128x128xbf16, #tpu.memory_space<vmem>>, %arg5: memref<1x128xf32, #tpu.memory_space<vmem>>, %arg6: memref<128x128xf32, #tpu.memory_space<vmem>>, %arg7: memref<128x128xf32, #tpu.memory_space<vmem>>) attributes {dimension_semantics = [#tpu.dimension_semantics<parallel>, #tpu.dimension_semantics<parallel>, #tpu.dimension_semantics<arbitrary>], iteration_bounds = array<i64: 1, 1, 1>, scalar_prefetch = 0 : i64, scratch_operands = 1 : i64, tpu.core_type = #tpu.core_type<tc>, window_params = [{transform_indices = @transform_0, window_bounds = array<i64: 128, 128>}, {transform_indices = @transform_1, window_bounds = array<i64: 128, 128>}, {transform_indices = @transform_2, window_bounds = array<i64: 1, 128>}, {transform_indices = @transform_3, window_bounds = array<i64: 128, 128>}]} {
    %c0_i32 = arith.constant 0 : i32
    %0 = arith.cmpi eq, %arg2, %c0_i32 : i32
    %1 = arith.extui %0 : i1 to i32
    %c0_i32_0 = arith.constant 0 : i32
    %2 = arith.cmpi ne, %1, %c0_i32_0 : i32
    scf.if %2 {
      %cst_10 = arith.constant 0.000000e+00 : f32
      %12 = vector.broadcast %cst_10 : f32 to vector<128x128xf32>
      %c0_11 = arith.constant 0 : index
      %c0_12 = arith.constant 0 : index
      %13 = vector.load %arg7[%c0_11, %c0_12] : memref<128x128xf32, #tpu.memory_space<vmem>>, vector<128x128xf32>
      tpu.vector_store %arg7[%c0_11, %c0_12], %12 {strides = array<i32>} : memref<128x128xf32, #tpu.memory_space<vmem>>, vector<128x128xf32>,
    } else {
    }
    %c0 = arith.constant 0 : index
    %c0_1 = arith.constant 0 : index
    %3 = vector.load %arg7[%c0, %c0_1] : memref<128x128xf32, #tpu.memory_space<vmem>>, vector<128x128xf32>
    %c0_2 = arith.constant 0 : index
    %c0_3 = arith.constant 0 : index
    %4 = vector.load %arg3[%c0_2, %c0_3] : memref<128x128xbf16, #tpu.memory_space<vmem>>, vector<128x128xbf16>
    %c0_4 = arith.constant 0 : index
    %c0_5 = arith.constant 0 : index
    %5 = vector.load %arg4[%c0_4, %c0_5] : memref<128x128xbf16, #tpu.memory_space<vmem>>, vector<128x128xbf16>
    %cst = arith.constant dense<0.000000e+00> : vector<128x128xf32>
    %6 = tpu.matmul %4, %5, %cst {dimension_numbers = #tpu.dot_dimension_numbers<[1], [0], [0], [1], [0, 0, 1, 1], [], []>} : vector<128x128xbf16>, vector<128x128xbf16>, vector<128x128xf32> -> vector<128x128xf32>
    %7 = arith.addf %3, %6 : vector<128x128xf32>
    %c0_6 = arith.constant 0 : index
    %c0_7 = arith.constant 0 : index
    %8 = vector.load %arg7[%c0_6, %c0_7] : memref<128x128xf32, #tpu.memory_space<vmem>>, vector<128x128xf32>
    tpu.vector_store %arg7[%c0_6, %c0_7], %7 {strides = array<i32>} : memref<128x128xf32, #tpu.memory_space<vmem>>, vector<128x128xf32>,
    %c0_i32_8 = arith.constant 0 : i32
    %9 = arith.cmpi eq, %arg2, %c0_i32_8 : i32
    %10 = arith.extui %9 : i1 to i32
    %c0_i32_9 = arith.constant 0 : i32
    %11 = arith.cmpi ne, %10, %c0_i32_9 : i32
    scf.if %11 {
      %c0_10 = arith.constant 0 : index
      %c0_11 = arith.constant 0 : index
      %12 = vector.load %arg7[%c0_10, %c0_11] : memref<128x128xf32, #tpu.memory_space<vmem>>, vector<128x128xf32>
      %c0_12 = arith.constant 0 : index
      %c0_13 = arith.constant 0 : index
      %13 = vector.load %arg5[%c0_12, %c0_13] : memref<1x128xf32, #tpu.memory_space<vmem>>, vector<1x128xf32>
      %14 = vector.broadcast %13 : vector<1x128xf32> to vector<128x128xf32>
      %15 = arith.addf %12, %14 : vector<128x128xf32>
      %cst_14 = arith.constant 0.000000e+00 : f32
      %16 = vector.broadcast %cst_14 : f32 to vector<128x128xf32>
      %17 = arith.maximumf %15, %16 : vector<128x128xf32>
      %c0_15 = arith.constant 0 : index
      %c0_16 = arith.constant 0 : index
      %18 = vector.load %arg6[%c0_15, %c0_16] : memref<128x128xf32, #tpu.memory_space<vmem>>, vector<128x128xf32>
      tpu.vector_store %arg6[%c0_15, %c0_16], %17 {strides = array<i32>} : memref<128x128xf32, #tpu.memory_space<vmem>>, vector<128x128xf32>,
    } else {
    }
    return
  }
  func.func @transform_0(%arg0: i32, %arg1: i32, %arg2: i32) -> (i32, i32) {
    %c0_i32 = arith.constant 0 : i32
    return %arg0, %arg2 : i32, i32
  }
  func.func @transform_1(%arg0: i32, %arg1: i32, %arg2: i32) -> (i32, i32) {
    %c0_i32 = arith.constant 0 : i32
    return %arg2, %arg1 : i32, i32
  }
  func.func @transform_2(%arg0: i32, %arg1: i32, %arg2: i32) -> (i32, i32) {
    %c0_i32 = arith.constant 0 : i32
    %c0_i32_0 = arith.constant 0 : i32
    return %c0_i32, %arg1 : i32, i32
  }
  func.func @transform_3(%arg0: i32, %arg1: i32, %arg2: i32) -> (i32, i32) {
    %c0_i32 = arith.constant 0 : i32
    return %arg0, %arg1 : i32, i32
  }
}

module attributes {stable_mosaic.version = 11 : i64} {
  func.func @_matmul_bias_relu_kernel(%arg0: i32, %arg1: i32, %arg2: i32, %arg3: memref<128x384xbf16, #tpu.memory_space<vmem>>, %arg4: memref<384x128xbf16, #tpu.memory_space<vmem>>, %arg5: memref<1x128xf32, #tpu.memory_space<vmem>>, %arg6: memref<128x128xf32, #tpu.memory_space<vmem>>, %arg7: memref<128x128xf32, #tpu.memory_space<vmem>>) attributes {dimension_semantics = [#tpu.dimension_semantics<parallel>, #tpu.dimension_semantics<parallel>, #tpu.dimension_semantics<arbitrary>], iteration_bounds = array<i64: 1, 1, 1>, scalar_prefetch = 0 : i64, scratch_operands = 1 : i64, tpu.core_type = #tpu.core_type<tc>, window_params = [{transform_indices = @transform_0, window_bounds = array<i64: 128, 384>}, {transform_indices = @transform_1, window_bounds = array<i64: 384, 128>}, {transform_indices = @transform_2, window_bounds = array<i64: 1, 128>}, {transform_indices = @transform_3, window_bounds = array<i64: 128, 128>}]} {
    %c0_i32 = arith.constant 0 : i32
    %0 = arith.cmpi eq, %arg2, %c0_i32 : i32
    %1 = arith.extui %0 : i1 to i32
    %c0_i32_0 = arith.constant 0 : i32
    %2 = arith.cmpi ne, %1, %c0_i32_0 : i32
    scf.if %2 {
      %cst_10 = arith.constant 0.000000e+00 : f32
      %12 = vector.broadcast %cst_10 : f32 to vector<128x128xf32>
      %c0_11 = arith.constant 0 : index
      %c0_12 = arith.constant 0 : index
      %13 = vector.load %arg7[%c0_11, %c0_12] : memref<128x128xf32, #tpu.memory_space<vmem>>, vector<128x128xf32>
      tpu.vector_store %arg7[%c0_11, %c0_12], %12 {strides = array<i32>} : memref<128x128xf32, #tpu.memory_space<vmem>>, vector<128x128xf32>,
    } else {
    }
    %c0 = arith.constant 0 : index
    %c0_1 = arith.constant 0 : index
    %3 = vector.load %arg7[%c0, %c0_1] : memref<128x128xf32, #tpu.memory_space<vmem>>, vector<128x128xf32>
    %c0_2 = arith.constant 0 : index
    %c0_3 = arith.constant 0 : index
    %4 = vector.load %arg3[%c0_2, %c0_3] : memref<128x384xbf16, #tpu.memory_space<vmem>>, vector<128x384xbf16>
    %c0_4 = arith.constant 0 : index
    %c0_5 = arith.constant 0 : index
    %5 = vector.load %arg4[%c0_4, %c0_5] : memref<384x128xbf16, #tpu.memory_space<vmem>>, vector<384x128xbf16>
    %cst = arith.constant dense<0.000000e+00> : vector<128x128xf32>
    %6 = tpu.matmul %4, %5, %cst {dimension_numbers = #tpu.dot_dimension_numbers<[1], [0], [0], [1], [0, 0, 1, 1], [], []>} : vector<128x384xbf16>, vector<384x128xbf16>, vector<128x128xf32> -> vector<128x128xf32>
    %7 = arith.addf %3, %6 : vector<128x128xf32>
    %c0_6 = arith.constant 0 : index
    %c0_7 = arith.constant 0 : index
    %8 = vector.load %arg7[%c0_6, %c0_7] : memref<128x128xf32, #tpu.memory_space<vmem>>, vector<128x128xf32>
    tpu.vector_store %arg7[%c0_6, %c0_7], %7 {strides = array<i32>} : memref<128x128xf32, #tpu.memory_space<vmem>>, vector<128x128xf32>,
    %c0_i32_8 = arith.constant 0 : i32
    %9 = arith.cmpi eq, %arg2, %c0_i32_8 : i32
    %10 = arith.extui %9 : i1 to i32
    %c0_i32_9 = arith.constant 0 : i32
    %11 = arith.cmpi ne, %10, %c0_i32_9 : i32
    scf.if %11 {
      %c0_10 = arith.constant 0 : index
      %c0_11 = arith.constant 0 : index
      %12 = vector.load %arg7[%c0_10, %c0_11] : memref<128x128xf32, #tpu.memory_space<vmem>>, vector<128x128xf32>
      %c0_12 = arith.constant 0 : index
      %c0_13 = arith.constant 0 : index
      %13 = vector.load %arg5[%c0_12, %c0_13] : memref<1x128xf32, #tpu.memory_space<vmem>>, vector<1x128xf32>
      %14 = vector.broadcast %13 : vector<1x128xf32> to vector<128x128xf32>
      %15 = arith.addf %12, %14 : vector<128x128xf32>
      %cst_14 = arith.constant 0.000000e+00 : f32
      %16 = vector.broadcast %cst_14 : f32 to vector<128x128xf32>
      %17 = arith.maximumf %15, %16 : vector<128x128xf32>
      %c0_15 = arith.constant 0 : index
      %c0_16 = arith.constant 0 : index
      %18 = vector.load %arg6[%c0_15, %c0_16] : memref<128x128xf32, #tpu.memory_space<vmem>>, vector<128x128xf32>
      tpu.vector_store %arg6[%c0_15, %c0_16], %17 {strides = array<i32>} : memref<128x128xf32, #tpu.memory_space<vmem>>, vector<128x128xf32>,
    } else {
    }
    return
  }
  func.func @transform_0(%arg0: i32, %arg1: i32, %arg2: i32) -> (i32, i32) {
    %c0_i32 = arith.constant 0 : i32
    return %arg0, %arg2 : i32, i32
  }
  func.func @transform_1(%arg0: i32, %arg1: i32, %arg2: i32) -> (i32, i32) {
    %c0_i32 = arith.constant 0 : i32
    return %arg2, %arg1 : i32, i32
  }
  func.func @transform_2(%arg0: i32, %arg1: i32, %arg2: i32) -> (i32, i32) {
    %c0_i32 = arith.constant 0 : i32
    %c0_i32_0 = arith.constant 0 : i32
    return %c0_i32, %arg1 : i32, i32
  }
  func.func @transform_3(%arg0: i32, %arg1: i32, %arg2: i32) -> (i32, i32) {
    %c0_i32 = arith.constant 0 : i32
    return %arg0, %arg1 : i32, i32
  }
}

</mosaic_0001>

<llo_original>
// kernel: module_init_forward.2
$region0: #{module_init_forward.2}
  #allocation0 [shape = 'u32[]', space=smem, size = 0x4, offset = 0x4, fixed_abs, tag = 'smem constant byte address 0x4 - core index']
  #allocation1 [shape = 'u32[144,128]{1,0:T(1,128)}', space=vmem, size = 0x12000, scoped, tag = 'internal scratch']
  #allocation2 [shape = 'f32[128,128]{1,0:T(8,128)}', space=vmem, size = 0x10000, scoped, tag = 'scratch operand']
  %s0 = inlined_call_operand.vmem [shape: bf16[128,128], index: 0, kind: input, shape index: {}]
  %s1 = inlined_call_operand.vmem [shape: bf16[128,128], index: 1, kind: input, shape index: {}]
  %s2 = inlined_call_operand.vmem [shape: f32[1,128], index: 2, kind: input, shape index: {}]
  %s3 = inlined_call_operand.vmem [shape: f32[128,128], index: 3, kind: output, shape index: {}]
  %s4 = sld [smem:[#allocation0]]
  $region30: #{module_init_forward.2} parent=0
    _
  %s6 = ssub.s32 1, %s4
  %s7 = scalar_select 0, %s6, %s4
  // Predicated region
  $region2: #{module_init_forward.2} parent=0 // pred_check
    _
  $region3: #{module_init_forward.2} parent=0 // pred_check_branch
    %9 = sbr.rel (0) target = $region5
  $region4: #{module_init_forward.2} parent=0 // pred_region
    _
  $region5: #{module_init_forward.2} parent=0 // pred_fallthru
    _
  // Predicated region
  $region6: #{module_init_forward.2} parent=0 // pred_check
    _
  $region7: #{module_init_forward.2} parent=0 // pred_check_branch
    %11 = sbr.rel (0) target = $region9
  $region8: #{module_init_forward.2} parent=0 // pred_region
    _
  $region9: #{module_init_forward.2} parent=0 // pred_fallthru
    _
  // Predicated region
  $region10: #{module_init_forward.2} parent=0 // pred_check
    _
  $region11: #{module_init_forward.2} parent=0 // pred_check_branch
    %13 = sbr.rel (0) target = $region13
  $region12: #{module_init_forward.2} parent=0 // pred_region
    _
  $region13: #{module_init_forward.2} parent=0 // pred_fallthru
    _
  %p15 = scmp.eq.s32.totalorder 0, 0
  // Predicated region
  $region14: #{module_init_forward.2} parent=0 // pred_check
    %p16 = pneg %p15
  $region15: #{module_init_forward.2} parent=0 // pred_check_branch
    %18 = sbr.rel (%p16) target = $region17
  $region16: #{module_init_forward.2} parent=0 // pred_region
    %19 = vst [vmem:[#allocation2] sm:$0xff] 0.0
    %20 = vst [vmem:[#allocation2 + $0x8] sm:$0xff] 0.0
    %21 = vst [vmem:[#allocation2 + $0x10] sm:$0xff] 0.0
    %22 = vst [vmem:[#allocation2 + $0x18] sm:$0xff] 0.0
    %23 = vst [vmem:[#allocation2 + $0x20] sm:$0xff] 0.0
    %24 = vst [vmem:[#allocation2 + $0x28] sm:$0xff] 0.0
    %25 = vst [vmem:[#allocation2 + $0x30] sm:$0xff] 0.0
    %26 = vst [vmem:[#allocation2 + $0x38] sm:$0xff] 0.0
    %27 = vst [vmem:[#allocation2 + $0x40] sm:$0xff] 0.0
    %28 = vst [vmem:[#allocation2 + $0x48] sm:$0xff] 0.0
    %29 = vst [vmem:[#allocation2 + $0x50] sm:$0xff] 0.0
    %30 = vst [vmem:[#allocation2 + $0x58] sm:$0xff] 0.0
    %31 = vst [vmem:[#allocation2 + $0x60] sm:$0xff] 0.0
    %32 = vst [vmem:[#allocation2 + $0x68] sm:$0xff] 0.0
    %33 = vst [vmem:[#allocation2 + $0x70] sm:$0xff] 0.0
    %34 = vst [vmem:[#allocation2 + $0x78] sm:$0xff] 0.0
  $region17: #{module_init_forward.2} parent=0 // pred_fallthru
    _
  %v35 = vld [vmem:[#allocation2] sm:$0xff]
  %v36 = vld [vmem:[#allocation2 + $0x8] sm:$0xff]
  %v37 = vld [vmem:[#allocation2 + $0x10] sm:$0xff]
  %v38 = vld [vmem:[#allocation2 + $0x18] sm:$0xff]
  %v39 = vld [vmem:[#allocation2 + $0x20] sm:$0xff]
  %v40 = vld [vmem:[#allocation2 + $0x28] sm:$0xff]
  %v41 = vld [vmem:[#allocation2 + $0x30] sm:$0xff]
  %v42 = vld [vmem:[#allocation2 + $0x38] sm:$0xff]
  %v43 = vld [vmem:[#allocation2 + $0x40] sm:$0xff]
  %v44 = vld [vmem:[#allocation2 + $0x48] sm:$0xff]
  %v45 = vld [vmem:[#allocation2 + $0x50] sm:$0xff]
  %v46 = vld [vmem:[#allocation2 + $0x58] sm:$0xff]
  %v47 = vld [vmem:[#allocation2 + $0x60] sm:$0xff]
  %v48 = vld [vmem:[#allocation2 + $0x68] sm:$0xff]
  %v49 = vld [vmem:[#allocation2 + $0x70] sm:$0xff]
  %v50 = vld [vmem:[#allocation2 + $0x78] sm:$0xff]
  %v51 = vld [vmem:[%s0] sm:$0xf]
  %v52 = vld [vmem:[%s0 + $0x4] sm:$0xf]
  %v53 = vld [vmem:[%s0 + $0x8] sm:$0xf]
  %v54 = vld [vmem:[%s0 + $0xc] sm:$0xf]
  %v55 = vld [vmem:[%s0 + $0x10] sm:$0xf]
  %v56 = vld [vmem:[%s0 + $0x14] sm:$0xf]
  %v57 = vld [vmem:[%s0 + $0x18] sm:$0xf]
  %v58 = vld [vmem:[%s0 + $0x1c] sm:$0xf]
  %v59 = vld [vmem:[%s0 + $0x20] sm:$0xf]
  %v60 = vld [vmem:[%s0 + $0x24] sm:$0xf]
  %v61 = vld [vmem:[%s0 + $0x28] sm:$0xf]
  %v62 = vld [vmem:[%s0 + $0x2c] sm:$0xf]
  %v63 = vld [vmem:[%s0 + $0x30] sm:$0xf]
  %v64 = vld [vmem:[%s0 + $0x34] sm:$0xf]
  %v65 = vld [vmem:[%s0 + $0x38] sm:$0xf]
  %v66 = vld [vmem:[%s0 + $0x3c] sm:$0xf]
  %v67 = vld [vmem:[%s1] sm:$0xf]
  %v68 = vld [vmem:[%s1 + $0x4] sm:$0xf]
  %v69 = vld [vmem:[%s1 + $0x8] sm:$0xf]
  %v70 = vld [vmem:[%s1 + $0xc] sm:$0xf]
  %v71 = vld [vmem:[%s1 + $0x10] sm:$0xf]
  %v72 = vld [vmem:[%s1 + $0x14] sm:$0xf]
  %v73 = vld [vmem:[%s1 + $0x18] sm:$0xf]
  %v74 = vld [vmem:[%s1 + $0x1c] sm:$0xf]
  %v75 = vld [vmem:[%s1 + $0x20] sm:$0xf]
  %v76 = vld [vmem:[%s1 + $0x24] sm:$0xf]
  %v77 = vld [vmem:[%s1 + $0x28] sm:$0xf]
  %v78 = vld [vmem:[%s1 + $0x2c] sm:$0xf]
  %v79 = vld [vmem:[%s1 + $0x30] sm:$0xf]
  %v80 = vld [vmem:[%s1 + $0x34] sm:$0xf]
  %v81 = vld [vmem:[%s1 + $0x38] sm:$0xf]
  %v82 = vld [vmem:[%s1 + $0x3c] sm:$0xf]
  %v99 = vunpack.c.l.b16 %v51
  %v100 = vunpack.c.l.b16 %v52
  %v101 = vunpack.c.l.b16 %v53
  %v102 = vunpack.c.l.b16 %v54
  %v103 = vunpack.c.l.b16 %v55
  %v104 = vunpack.c.l.b16 %v56
  %v105 = vunpack.c.l.b16 %v57
  %v106 = vunpack.c.l.b16 %v58
  %v107 = vunpack.c.l.b16 %v59
  %v108 = vunpack.c.l.b16 %v60
  %v109 = vunpack.c.l.b16 %v61
  %v110 = vunpack.c.l.b16 %v62
  %v111 = vunpack.c.l.b16 %v63
  %v112 = vunpack.c.l.b16 %v64
  %v113 = vunpack.c.l.b16 %v65
  %v114 = vunpack.c.l.b16 %v66
  %v115 = vpack.c.b16 %v100, %v99
  %v116 = vpack.c.b16 %v102, %v101
  %v117 = vpack.c.b16 %v104, %v103
  %v118 = vpack.c.b16 %v106, %v105
  %v119 = vpack.c.b16 %v108, %v107
  %v120 = vpack.c.b16 %v110, %v109
  %v121 = vpack.c.b16 %v112, %v111
  %v122 = vpack.c.b16 %v114, %v113
  %v147 = vunpack.c.l.b16 %v67
  %v148 = vunpack.c.l.b16 %v68
  %v149 = vunpack.c.l.b16 %v69
  %v150 = vunpack.c.l.b16 %v70
  %v151 = vunpack.c.l.b16 %v71
  %v152 = vunpack.c.l.b16 %v72
  %v153 = vunpack.c.l.b16 %v73
  %v154 = vunpack.c.l.b16 %v74
  %v155 = vunpack.c.l.b16 %v75
  %v156 = vunpack.c.l.b16 %v76
  %v157 = vunpack.c.l.b16 %v77
  %v158 = vunpack.c.l.b16 %v78
  %v159 = vunpack.c.l.b16 %v79
  %v160 = vunpack.c.l.b16 %v80
  %v161 = vunpack.c.l.b16 %v81
  %v162 = vunpack.c.l.b16 %v82
  %v163 = vpack.c.b16 %v148, %v147
  %v164 = vpack.c.b16 %v150, %v149
  %v165 = vpack.c.b16 %v152, %v151
  %v166 = vpack.c.b16 %v154, %v153
  %v167 = vpack.c.b16 %v156, %v155
  %v168 = vpack.c.b16 %v158, %v157
  %v169 = vpack.c.b16 %v160, %v159
  %v170 = vpack.c.b16 %v162, %v161
  %179 = vmatprep.subr.bf16.mxu0 0
  %180 = vmatpush1.bf16.msra.mxu0 %v163
  %181 = vmatprep.subr.bf16.mxu0 0
  %182 = vmatpush1.bf16.msra.mxu0 %v164
  %183 = vmatprep.subr.bf16.mxu0 0
  %184 = vmatpush1.bf16.msra.mxu0 %v165
  %185 = vmatprep.subr.bf16.mxu0 0
  %186 = vmatpush1.bf16.msra.mxu0 %v166
  %187 = vmatprep.subr.bf16.mxu0 0
  %188 = vmatpush1.bf16.msra.mxu0 %v167
  %189 = vmatprep.subr.bf16.mxu0 0
  %190 = vmatpush1.bf16.msra.mxu0 %v168
  %191 = vmatprep.subr.bf16.mxu0 0
  %192 = vmatpush1.bf16.msra.mxu0 %v169
  %193 = vmatprep.subr.bf16.mxu0 0
  %194 = vmatpush1.bf16.msra.mxu0 %v170
  %195 = vmatprep.subr.bf16.mxu0 0
  %196 = vmatpush1.bf16.msra.mxu0 0
  %197 = vmatprep.subr.bf16.mxu0 0
  %198 = vmatpush1.bf16.msra.mxu0 0
  %199 = vmatprep.subr.bf16.mxu0 0
  %200 = vmatpush1.bf16.msra.mxu0 0
  %201 = vmatprep.subr.bf16.mxu0 0
  %202 = vmatpush1.bf16.msra.mxu0 0
  %203 = vmatprep.subr.bf16.mxu0 0
  %204 = vmatpush1.bf16.msra.mxu0 0
  %205 = vmatprep.subr.bf16.mxu0 0
  %206 = vmatpush1.bf16.msra.mxu0 0
  %207 = vmatprep.subr.bf16.mxu0 0
  %208 = vmatpush1.bf16.msra.mxu0 0
  %209 = vmatprep.subr.bf16.mxu0 0
  %210 = vmatpush1.bf16.msra.mxu0 0
  %211 = vmatprep.mubr.bf16.mxu0 0
  %212 = vmatmul.mubr.bf16.gmra.mrb[0].mxu0 %v115
  %v213 = vpop.f32.mrb[0].mxu0
  %v214 = vadd.f32 0.0, %v213
  %v215 = vpop.f32.mrb[0].mxu0
  %v216 = vpop.f32.mrb[0].mxu0
  %v217 = vadd.f32 0.0, %v216
  %v218 = vpop.f32.mrb[0].mxu0
  %219 = vmatprep.mubr.bf16.mxu0 0
  %220 = vmatmul.mubr.bf16.gmra.mrb[0].mxu0 %v116
  %v221 = vpop.f32.mrb[0].mxu0
  %v222 = vadd.f32 0.0, %v221
  %v223 = vpop.f32.mrb[0].mxu0
  %v224 = vpop.f32.mrb[0].mxu0
  %v225 = vadd.f32 0.0, %v224
  %v226 = vpop.f32.mrb[0].mxu0
  %227 = vmatprep.mubr.bf16.mxu0 0
  %228 = vmatmul.mubr.bf16.gmra.mrb[0].mxu0 %v117
  %v229 = vpop.f32.mrb[0].mxu0
  %v230 = vadd.f32 0.0, %v229
  %v231 = vpop.f32.mrb[0].mxu0
  %v232 = vpop.f32.mrb[0].mxu0
  %v233 = vadd.f32 0.0, %v232
  %v234 = vpop.f32.mrb[0].mxu0
  %235 = vmatprep.mubr.bf16.mxu0 0
  %236 = vmatmul.mubr.bf16.gmra.mrb[0].mxu0 %v118
  %v237 = vpop.f32.mrb[0].mxu0
  %v238 = vadd.f32 0.0, %v237
  %v239 = vpop.f32.mrb[0].mxu0
  %v240 = vpop.f32.mrb[0].mxu0
  %v241 = vadd.f32 0.0, %v240
  %v242 = vpop.f32.mrb[0].mxu0
  %243 = vmatprep.mubr.bf16.mxu0 0
  %244 = vmatmul.mubr.bf16.gmra.mrb[0].mxu0 %v119
  %v245 = vpop.f32.mrb[0].mxu0
  %v246 = vadd.f32 0.0, %v245
  %v247 = vpop.f32.mrb[0].mxu0
  %v248 = vpop.f32.mrb[0].mxu0
  %v249 = vadd.f32 0.0, %v248
  %v250 = vpop.f32.mrb[0].mxu0
  %251 = vmatprep.mubr.bf16.mxu0 0
  %252 = vmatmul.mubr.bf16.gmra.mrb[0].mxu0 %v120
  %v253 = vpop.f32.mrb[0].mxu0
  %v254 = vadd.f32 0.0, %v253
  %v255 = vpop.f32.mrb[0].mxu0
  %v256 = vpop.f32.mrb[0].mxu0
  %v257 = vadd.f32 0.0, %v256
  %v258 = vpop.f32.mrb[0].mxu0
  %259 = vmatprep.mubr.bf16.mxu0 0
  %260 = vmatmul.mubr.bf16.gmra.mrb[0].mxu0 %v121
  %v261 = vpop.f32.mrb[0].mxu0
  %v262 = vadd.f32 0.0, %v261
  %v263 = vpop.f32.mrb[0].mxu0
  %v264 = vpop.f32.mrb[0].mxu0
  %v265 = vadd.f32 0.0, %v264
  %v266 = vpop.f32.mrb[0].mxu0
  %267 = vmatprep.mubr.bf16.mxu0 0
  %268 = vmatmul.mubr.bf16.gmra.mrb[0].mxu0 %v122
  %v269 = vpop.f32.mrb[0].mxu0
  %v270 = vadd.f32 0.0, %v269
  %v271 = vpop.f32.mrb[0].mxu0
  %v272 = vpop.f32.mrb[0].mxu0
  %v273 = vadd.f32 0.0, %v272
  %v274 = vpop.f32.mrb[0].mxu0
  %275 = vdwg.mxu0
  %v276 = vadd.f32 %v35, %v214
  %v277 = vadd.f32 %v36, %v217
  %v278 = vadd.f32 %v37, %v222
  %v279 = vadd.f32 %v38, %v225
  %v280 = vadd.f32 %v39, %v230
  %v281 = vadd.f32 %v40, %v233
  %v282 = vadd.f32 %v41, %v238
  %v283 = vadd.f32 %v42, %v241
  %v284 = vadd.f32 %v43, %v246
  %v285 = vadd.f32 %v44, %v249
  %v286 = vadd.f32 %v45, %v254
  %v287 = vadd.f32 %v46, %v257
  %v288 = vadd.f32 %v47, %v262
  %v289 = vadd.f32 %v48, %v265
  %v290 = vadd.f32 %v49, %v270
  %v291 = vadd.f32 %v50, %v273
  %292 = vst [vmem:[#allocation2] sm:$0xff] %v276
  %293 = vst [vmem:[#allocation2 + $0x8] sm:$0xff] %v277
  %294 = vst [vmem:[#allocation2 + $0x10] sm:$0xff] %v278
  %295 = vst [vmem:[#allocation2 + $0x18] sm:$0xff] %v279
  %296 = vst [vmem:[#allocation2 + $0x20] sm:$0xff] %v280
  %297 = vst [vmem:[#allocation2 + $0x28] sm:$0xff] %v281
  %298 = vst [vmem:[#allocation2 + $0x30] sm:$0xff] %v282
  %299 = vst [vmem:[#allocation2 + $0x38] sm:$0xff] %v283
  %300 = vst [vmem:[#allocation2 + $0x40] sm:$0xff] %v284
  %301 = vst [vmem:[#allocation2 + $0x48] sm:$0xff] %v285
  %302 = vst [vmem:[#allocation2 + $0x50] sm:$0xff] %v286
  %303 = vst [vmem:[#allocation2 + $0x58] sm:$0xff] %v287
  %304 = vst [vmem:[#allocation2 + $0x60] sm:$0xff] %v288
  %305 = vst [vmem:[#allocation2 + $0x68] sm:$0xff] %v289
  %306 = vst [vmem:[#allocation2 + $0x70] sm:$0xff] %v290
  %307 = vst [vmem:[#allocation2 + $0x78] sm:$0xff] %v291
  // Predicated region
  $region18: #{module_init_forward.2} parent=0 // pred_check
    %p308 = pneg %p15
  $region19: #{module_init_forward.2} parent=0 // pred_check_branch
    %310 = sbr.rel (%p308) target = $region21
  $region20: #{module_init_forward.2} parent=0 // pred_region
    %v311 = vld [vmem:[#allocation2] sm:$0xff]
    %v312 = vld [vmem:[#allocation2 + $0x8] sm:$0xff]
    %v313 = vld [vmem:[#allocation2 + $0x10] sm:$0xff]
    %v314 = vld [vmem:[#allocation2 + $0x18] sm:$0xff]
    %v315 = vld [vmem:[#allocation2 + $0x20] sm:$0xff]
    %v316 = vld [vmem:[#allocation2 + $0x28] sm:$0xff]
    %v317 = vld [vmem:[#allocation2 + $0x30] sm:$0xff]
    %v318 = vld [vmem:[#allocation2 + $0x38] sm:$0xff]
    %v319 = vld [vmem:[#allocation2 + $0x40] sm:$0xff]
    %v320 = vld [vmem:[#allocation2 + $0x48] sm:$0xff]
    %v321 = vld [vmem:[#allocation2 + $0x50] sm:$0xff]
    %v322 = vld [vmem:[#allocation2 + $0x58] sm:$0xff]
    %v323 = vld [vmem:[#allocation2 + $0x60] sm:$0xff]
    %v324 = vld [vmem:[#allocation2 + $0x68] sm:$0xff]
    %v325 = vld [vmem:[#allocation2 + $0x70] sm:$0xff]
    %v326 = vld [vmem:[#allocation2 + $0x78] sm:$0xff]
    %v327 = vld [vmem:[%s2] sm:$0x1]
    %v329 = vlaneseq
    %v330 = vshrl.u32 %v329, 7
    %v331 = vsub.s32 0, %v330
    %v332 = vrot.slane %v327, %v331
    %v334 = vadd.f32 %v311, %v332
    %v335 = vadd.f32 %v312, %v332
    %v336 = vadd.f32 %v313, %v332
    %v337 = vadd.f32 %v314, %v332
    %v338 = vadd.f32 %v315, %v332
    %v339 = vadd.f32 %v316, %v332
    %v340 = vadd.f32 %v317, %v332
    %v341 = vadd.f32 %v318, %v332
    %v342 = vadd.f32 %v319, %v332
    %v343 = vadd.f32 %v320, %v332
    %v344 = vadd.f32 %v321, %v332
    %v345 = vadd.f32 %v322, %v332
    %v346 = vadd.f32 %v323, %v332
    %v347 = vadd.f32 %v324, %v332
    %v348 = vadd.f32 %v325, %v332
    %v349 = vadd.f32 %v326, %v332
    %v350 = vmax.f32 %v334, 0.0
    %v351 = vmax.f32 %v335, 0.0
    %v352 = vmax.f32 %v336, 0.0
    %v353 = vmax.f32 %v337, 0.0
    %v354 = vmax.f32 %v338, 0.0
    %v355 = vmax.f32 %v339, 0.0
    %v356 = vmax.f32 %v340, 0.0
    %v357 = vmax.f32 %v341, 0.0
    %v358 = vmax.f32 %v342, 0.0
    %v359 = vmax.f32 %v343, 0.0
    %v360 = vmax.f32 %v344, 0.0
    %v361 = vmax.f32 %v345, 0.0
    %v362 = vmax.f32 %v346, 0.0
    %v363 = vmax.f32 %v347, 0.0
    %v364 = vmax.f32 %v348, 0.0
    %v365 = vmax.f32 %v349, 0.0
    %366 = vst [vmem:[%s3] sm:$0xff] %v350
    %367 = vst [vmem:[%s3 + $0x8] sm:$0xff] %v351
    %368 = vst [vmem:[%s3 + $0x10] sm:$0xff] %v352
    %369 = vst [vmem:[%s3 + $0x18] sm:$0xff] %v353
    %370 = vst [vmem:[%s3 + $0x20] sm:$0xff] %v354
    %371 = vst [vmem:[%s3 + $0x28] sm:$0xff] %v355
    %372 = vst [vmem:[%s3 + $0x30] sm:$0xff] %v356
    %373 = vst [vmem:[%s3 + $0x38] sm:$0xff] %v357
    %374 = vst [vmem:[%s3 + $0x40] sm:$0xff] %v358
    %375 = vst [vmem:[%s3 + $0x48] sm:$0xff] %v359
    %376 = vst [vmem:[%s3 + $0x50] sm:$0xff] %v360
    %377 = vst [vmem:[%s3 + $0x58] sm:$0xff] %v361
    %378 = vst [vmem:[%s3 + $0x60] sm:$0xff] %v362
    %379 = vst [vmem:[%s3 + $0x68] sm:$0xff] %v363
    %380 = vst [vmem:[%s3 + $0x70] sm:$0xff] %v364
    %381 = vst [vmem:[%s3 + $0x78] sm:$0xff] %v365
  $region21: #{module_init_forward.2} parent=0 // pred_fallthru
    _
  // Predicated region
  $region22: #{module_init_forward.2} parent=0 // pred_check
    _
  $region23: #{module_init_forward.2} parent=0 // pred_check_branch
    %383 = sbr.rel (0) target = $region25
  $region24: #{module_init_forward.2} parent=0 // pred_region
    _
  $region25: #{module_init_forward.2} parent=0 // pred_fallthru
    _
  // Predicated region
  $region26: #{module_init_forward.2} parent=0 // pred_check
    _
  $region27: #{module_init_forward.2} parent=0 // pred_check_branch
    %385 = sbr.rel (0) target = $region29
  $region28: #{module_init_forward.2} parent=0 // pred_region
    _
  $region29: #{module_init_forward.2} parent=0 // pred_fallthru
    _

// kernel: module_init_forward.3
$region0: #{module_init_forward.3}
  #allocation0 [shape = 'u32[]', space=smem, size = 0x4, offset = 0x4, fixed_abs, tag = 'smem constant byte address 0x4 - core index']
  #allocation1 [shape = 'u32[144,128]{1,0:T(1,128)}', space=vmem, size = 0x12000, scoped, tag = 'internal scratch']
  #allocation2 [shape = 'f32[128,128]{1,0:T(8,128)}', space=vmem, size = 0x10000, scoped, tag = 'scratch operand']
  %s0 = inlined_call_operand.vmem [shape: bf16[128,384], index: 0, kind: input, shape index: {}]
  %s1 = inlined_call_operand.vmem [shape: bf16[384,128], index: 1, kind: input, shape index: {}]
  %s2 = inlined_call_operand.vmem [shape: f32[1,128], index: 2, kind: input, shape index: {}]
  %s3 = inlined_call_operand.hbm [shape: f32[128,128], index: 3, kind: output, shape index: {}]
  %s4 = sld [smem:[#allocation0]]
  $region30: #{module_init_forward.3} parent=0
    _
  %s6 = ssub.s32 1, %s4
  %s7 = scalar_select 0, %s6, %s4
  $region1: #{module_init_forward.3} parent=0
    #allocation3 [shape = 'u8[65536]{0}', space=vmem, size = 0x10000, scoped, tag = 'output window, operand 0, single buffered']
    #allocation4 [shape = 's32[1]{0}', space=sflag, size = 0x4, scoped, tag = 'scoped memory for module_init_forward.3']
    %8 = vsyncpa [#allocation4], 0
    // Predicated region
    $region2: #{module_init_forward.3} parent=1 // pred_check
      _
    $region3: #{module_init_forward.3} parent=1 // pred_check_branch
      %10 = sbr.rel (0) target = $region5
    $region4: #{module_init_forward.3} parent=1 // pred_region
      _
    $region5: #{module_init_forward.3} parent=1 // pred_fallthru
      _
    // Predicated region
    $region6: #{module_init_forward.3} parent=1 // pred_check
      _
    $region7: #{module_init_forward.3} parent=1 // pred_check_branch
      %12 = sbr.rel (0) target = $region9
    $region8: #{module_init_forward.3} parent=1 // pred_region
      _
    $region9: #{module_init_forward.3} parent=1 // pred_fallthru
      _
    // Predicated region
    $region10: #{module_init_forward.3} parent=1 // pred_check
      _
    $region11: #{module_init_forward.3} parent=1 // pred_check_branch
      %14 = sbr.rel (0) target = $region13
    $region12: #{module_init_forward.3} parent=1 // pred_region
      _
    $region13: #{module_init_forward.3} parent=1 // pred_fallthru
      _
    %p16 = scmp.eq.s32.totalorder 0, 0
    // Predicated region
    $region14: #{module_init_forward.3} parent=1 // pred_check
      %p17 = pneg %p16
    $region15: #{module_init_forward.3} parent=1 // pred_check_branch
      %19 = sbr.rel (%p17) target = $region17
    $region16: #{module_init_forward.3} parent=1 // pred_region
      %20 = vst [vmem:[#allocation2] sm:$0xff] 0.0
      %21 = vst [vmem:[#allocation2 + $0x8] sm:$0xff] 0.0
      %22 = vst [vmem:[#allocation2 + $0x10] sm:$0xff] 0.0
      %23 = vst [vmem:[#allocation2 + $0x18] sm:$0xff] 0.0
      %24 = vst [vmem:[#allocation2 + $0x20] sm:$0xff] 0.0
      %25 = vst [vmem:[#allocation2 + $0x28] sm:$0xff] 0.0
      %26 = vst [vmem:[#allocation2 + $0x30] sm:$0xff] 0.0
      %27 = vst [vmem:[#allocation2 + $0x38] sm:$0xff] 0.0
      %28 = vst [vmem:[#allocation2 + $0x40] sm:$0xff] 0.0
      %29 = vst [vmem:[#allocation2 + $0x48] sm:$0xff] 0.0
      %30 = vst [vmem:[#allocation2 + $0x50] sm:$0xff] 0.0
      %31 = vst [vmem:[#allocation2 + $0x58] sm:$0xff] 0.0
      %32 = vst [vmem:[#allocation2 + $0x60] sm:$0xff] 0.0
      %33 = vst [vmem:[#allocation2 + $0x68] sm:$0xff] 0.0
      %34 = vst [vmem:[#allocation2 + $0x70] sm:$0xff] 0.0
      %35 = vst [vmem:[#allocation2 + $0x78] sm:$0xff] 0.0
    $region17: #{module_init_forward.3} parent=1 // pred_fallthru
      _
    %v36 = vld [vmem:[#allocation2] sm:$0xff]
    %v37 = vld [vmem:[#allocation2 + $0x8] sm:$0xff]
    %v38 = vld [vmem:[#allocation2 + $0x10] sm:$0xff]
    %v39 = vld [vmem:[#allocation2 + $0x18] sm:$0xff]
    %v40 = vld [vmem:[#allocation2 + $0x20] sm:$0xff]
    %v41 = vld [vmem:[#allocation2 + $0x28] sm:$0xff]
    %v42 = vld [vmem:[#allocation2 + $0x30] sm:$0xff]
    %v43 = vld [vmem:[#allocation2 + $0x38] sm:$0xff]
    %v44 = vld [vmem:[#allocation2 + $0x40] sm:$0xff]
    %v45 = vld [vmem:[#allocation2 + $0x48] sm:$0xff]
    %v46 = vld [vmem:[#allocation2 + $0x50] sm:$0xff]
    %v47 = vld [vmem:[#allocation2 + $0x58] sm:$0xff]
    %v48 = vld [vmem:[#allocation2 + $0x60] sm:$0xff]
    %v49 = vld [vmem:[#allocation2 + $0x68] sm:$0xff]
    %v50 = vld [vmem:[#allocation2 + $0x70] sm:$0xff]
    %v51 = vld [vmem:[#allocation2 + $0x78] sm:$0xff]
    %v52 = vld [vmem:[%s0] sm:$0xff]
    %v53 = vld [vmem:[%s0 + $0x8] sm:$0xf]
    %v54 = vld [vmem:[%s0 + $0xc] sm:$0xff]
    %v55 = vld [vmem:[%s0 + $0x14] sm:$0xf]
    %v56 = vld [vmem:[%s0 + $0x18] sm:$0xff]
    %v57 = vld [vmem:[%s0 + $0x20] sm:$0xf]
    %v58 = vld [vmem:[%s0 + $0x24] sm:$0xff]
    %v59 = vld [vmem:[%s0 + $0x2c] sm:$0xf]
    %v60 = vld [vmem:[%s0 + $0x30] sm:$0xff]
    %v61 = vld [vmem:[%s0 + $0x38] sm:$0xf]
    %v62 = vld [vmem:[%s0 + $0x3c] sm:$0xff]
    %v63 = vld [vmem:[%s0 + $0x44] sm:$0xf]
    %v64 = vld [vmem:[%s0 + $0x48] sm:$0xff]
    %v65 = vld [vmem:[%s0 + $0x50] sm:$0xf]
    %v66 = vld [vmem:[%s0 + $0x54] sm:$0xff]
    %v67 = vld [vmem:[%s0 + $0x5c] sm:$0xf]
    %v68 = vld [vmem:[%s0 + $0x60] sm:$0xff]
    %v69 = vld [vmem:[%s0 + $0x68] sm:$0xf]
    %v70 = vld [vmem:[%s0 + $0x6c] sm:$0xff]
    %v71 = vld [vmem:[%s0 + $0x74] sm:$0xf]
    %v72 = vld [vmem:[%s0 + $0x78] sm:$0xff]
    %v73 = vld [vmem:[%s0 + $0x80] sm:$0xf]
    %v74 = vld [vmem:[%s0 + $0x84] sm:$0xff]
    %v75 = vld [vmem:[%s0 + $0x8c] sm:$0xf]
    %v76 = vld [vmem:[%s0 + $0x90] sm:$0xff]
    %v77 = vld [vmem:[%s0 + $0x98] sm:$0xf]
    %v78 = vld [vmem:[%s0 + $0x9c] sm:$0xff]
    %v79 = vld [vmem:[%s0 + $0xa4] sm:$0xf]
    %v80 = vld [vmem:[%s0 + $0xa8] sm:$0xff]
    %v81 = vld [vmem:[%s0 + $0xb0] sm:$0xf]
    %v82 = vld [vmem:[%s0 + $0xb4] sm:$0xff]
    %v83 = vld [vmem:[%s0 + $0xbc] sm:$0xf]
    %v84 = vld [vmem:[%s1] sm:$0xf]
    %v85 = vld [vmem:[%s1 + $0x4] sm:$0xf]
    %v86 = vld [vmem:[%s1 + $0x8] sm:$0xf]
    %v87 = vld [vmem:[%s1 + $0xc] sm:$0xf]
    %v88 = vld [vmem:[%s1 + $0x10] sm:$0xf]
    %v89 = vld [vmem:[%s1 + $0x14] sm:$0xf]
    %v90 = vld [vmem:[%s1 + $0x18] sm:$0xf]
    %v91 = vld [vmem:[%s1 + $0x1c] sm:$0xf]
    %v92 = vld [vmem:[%s1 + $0x20] sm:$0xf]
    %v93 = vld [vmem:[%s1 + $0x24] sm:$0xf]
    %v94 = vld [vmem:[%s1 + $0x28] sm:$0xf]
    %v95 = vld [vmem:[%s1 + $0x2c] sm:$0xf]
    %v96 = vld [vmem:[%s1 + $0x30] sm:$0xf]
    %v97 = vld [vmem:[%s1 + $0x34] sm:$0xf]
    %v98 = vld [vmem:[%s1 + $0x38] sm:$0xf]
    %v99 = vld [vmem:[%s1 + $0x3c] sm:$0xf]
    %v100 = vld [vmem:[%s1 + $0x40] sm:$0xf]
    %v101 = vld [vmem:[%s1 + $0x44] sm:$0xf]
    %v102 = vld [vmem:[%s1 + $0x48] sm:$0xf]
    %v103 = vld [vmem:[%s1 + $0x4c] sm:$0xf]
    %v104 = vld [vmem:[%s1 + $0x50] sm:$0xf]
    %v105 = vld [vmem:[%s1 + $0x54] sm:$0xf]
    %v106 = vld [vmem:[%s1 + $0x58] sm:$0xf]
    %v107 = vld [vmem:[%s1 + $0x5c] sm:$0xf]
    %v108 = vld [vmem:[%s1 + $0x60] sm:$0xf]
    %v109 = vld [vmem:[%s1 + $0x64] sm:$0xf]
    %v110 = vld [vmem:[%s1 + $0x68] sm:$0xf]
    %v111 = vld [vmem:[%s1 + $0x6c] sm:$0xf]
    %v112 = vld [vmem:[%s1 + $0x70] sm:$0xf]
    %v113 = vld [vmem:[%s1 + $0x74] sm:$0xf]
    %v114 = vld [vmem:[%s1 + $0x78] sm:$0xf]
    %v115 = vld [vmem:[%s1 + $0x7c] sm:$0xf]
    %v116 = vld [vmem:[%s1 + $0x80] sm:$0xf]
    %v117 = vld [vmem:[%s1 + $0x84] sm:$0xf]
    %v118 = vld [vmem:[%s1 + $0x88] sm:$0xf]
    %v119 = vld [vmem:[%s1 + $0x8c] sm:$0xf]
    %v120 = vld [vmem:[%s1 + $0x90] sm:$0xf]
    %v121 = vld [vmem:[%s1 + $0x94] sm:$0xf]
    %v122 = vld [vmem:[%s1 + $0x98] sm:$0xf]
    %v123 = vld [vmem:[%s1 + $0x9c] sm:$0xf]
    %v124 = vld [vmem:[%s1 + $0xa0] sm:$0xf]
    %v125 = vld [vmem:[%s1 + $0xa4] sm:$0xf]
    %v126 = vld [vmem:[%s1 + $0xa8] sm:$0xf]
    %v127 = vld [vmem:[%s1 + $0xac] sm:$0xf]
    %v128 = vld [vmem:[%s1 + $0xb0] sm:$0xf]
    %v129 = vld [vmem:[%s1 + $0xb4] sm:$0xf]
    %v130 = vld [vmem:[%s1 + $0xb8] sm:$0xf]
    %v131 = vld [vmem:[%s1 + $0xbc] sm:$0xf]
    %v164 = vunpack.c.l.b16 %v52
    %v165 = vunpack.c.h.b16 %v52
    %v166 = vunpack.c.l.b16 %v53
    %v167 = vunpack.c.l.b16 %v54
    %v168 = vunpack.c.h.b16 %v54
    %v169 = vunpack.c.l.b16 %v55
    %v170 = vunpack.c.l.b16 %v56
    %v171 = vunpack.c.h.b16 %v56
    %v172 = vunpack.c.l.b16 %v57
    %v173 = vunpack.c.l.b16 %v58
    %v174 = vunpack.c.h.b16 %v58
    %v175 = vunpack.c.l.b16 %v59
    %v176 = vunpack.c.l.b16 %v60
    %v177 = vunpack.c.h.b16 %v60
    %v178 = vunpack.c.l.b16 %v61
    %v179 = vunpack.c.l.b16 %v62
    %v180 = vunpack.c.h.b16 %v62
    %v181 = vunpack.c.l.b16 %v63
    %v182 = vunpack.c.l.b16 %v64
    %v183 = vunpack.c.h.b16 %v64
    %v184 = vunpack.c.l.b16 %v65
    %v185 = vunpack.c.l.b16 %v66
    %v186 = vunpack.c.h.b16 %v66
    %v187 = vunpack.c.l.b16 %v67
    %v188 = vunpack.c.l.b16 %v68
    %v189 = vunpack.c.h.b16 %v68
    %v190 = vunpack.c.l.b16 %v69
    %v191 = vunpack.c.l.b16 %v70
    %v192 = vunpack.c.h.b16 %v70
    %v193 = vunpack.c.l.b16 %v71
    %v194 = vunpack.c.l.b16 %v72
    %v195 = vunpack.c.h.b16 %v72
    %v196 = vunpack.c.l.b16 %v73
    %v197 = vunpack.c.l.b16 %v74
    %v198 = vunpack.c.h.b16 %v74
    %v199 = vunpack.c.l.b16 %v75
    %v200 = vunpack.c.l.b16 %v76
    %v201 = vunpack.c.h.b16 %v76
    %v202 = vunpack.c.l.b16 %v77
    %v203 = vunpack.c.l.b16 %v78
    %v204 = vunpack.c.h.b16 %v78
    %v205 = vunpack.c.l.b16 %v79
    %v206 = vunpack.c.l.b16 %v80
    %v207 = vunpack.c.h.b16 %v80
    %v208 = vunpack.c.l.b16 %v81
    %v209 = vunpack.c.l.b16 %v82
    %v210 = vunpack.c.h.b16 %v82
    %v211 = vunpack.c.l.b16 %v83
    %v212 = vpack.c.b16 %v167, %v164
    %v213 = vpack.c.b16 %v168, %v165
    %v214 = vpack.c.b16 %v169, %v166
    %v215 = vpack.c.b16 %v173, %v170
    %v216 = vpack.c.b16 %v174, %v171
    %v217 = vpack.c.b16 %v175, %v172
    %v218 = vpack.c.b16 %v179, %v176
    %v219 = vpack.c.b16 %v180, %v177
    %v220 = vpack.c.b16 %v181, %v178
    %v221 = vpack.c.b16 %v185, %v182
    %v222 = vpack.c.b16 %v186, %v183
    %v223 = vpack.c.b16 %v187, %v184
    %v224 = vpack.c.b16 %v191, %v188
    %v225 = vpack.c.b16 %v192, %v189
    %v226 = vpack.c.b16 %v193, %v190
    %v227 = vpack.c.b16 %v197, %v194
    %v228 = vpack.c.b16 %v198, %v195
    %v229 = vpack.c.b16 %v199, %v196
    %v230 = vpack.c.b16 %v203, %v200
    %v231 = vpack.c.b16 %v204, %v201
    %v232 = vpack.c.b16 %v205, %v202
    %v233 = vpack.c.b16 %v209, %v206
    %v234 = vpack.c.b16 %v210, %v207
    %v235 = vpack.c.b16 %v211, %v208
    %v308 = vunpack.c.l.b16 %v84
    %v309 = vunpack.c.l.b16 %v85
    %v310 = vunpack.c.l.b16 %v86
    %v311 = vunpack.c.l.b16 %v87
    %v312 = vunpack.c.l.b16 %v88
    %v313 = vunpack.c.l.b16 %v89
    %v314 = vunpack.c.l.b16 %v90
    %v315 = vunpack.c.l.b16 %v91
    %v316 = vunpack.c.l.b16 %v92
    %v317 = vunpack.c.l.b16 %v93
    %v318 = vunpack.c.l.b16 %v94
    %v319 = vunpack.c.l.b16 %v95
    %v320 = vunpack.c.l.b16 %v96
    %v321 = vunpack.c.l.b16 %v97
    %v322 = vunpack.c.l.b16 %v98
    %v323 = vunpack.c.l.b16 %v99
    %v324 = vunpack.c.l.b16 %v100
    %v325 = vunpack.c.l.b16 %v101
    %v326 = vunpack.c.l.b16 %v102
    %v327 = vunpack.c.l.b16 %v103
    %v328 = vunpack.c.l.b16 %v104
    %v329 = vunpack.c.l.b16 %v105
    %v330 = vunpack.c.l.b16 %v106
    %v331 = vunpack.c.l.b16 %v107
    %v332 = vunpack.c.l.b16 %v108
    %v333 = vunpack.c.l.b16 %v109
    %v334 = vunpack.c.l.b16 %v110
    %v335 = vunpack.c.l.b16 %v111
    %v336 = vunpack.c.l.b16 %v112
    %v337 = vunpack.c.l.b16 %v113
    %v338 = vunpack.c.l.b16 %v114
    %v339 = vunpack.c.l.b16 %v115
    %v340 = vunpack.c.l.b16 %v116
    %v341 = vunpack.c.l.b16 %v117
    %v342 = vunpack.c.l.b16 %v118
    %v343 = vunpack.c.l.b16 %v119
    %v344 = vunpack.c.l.b16 %v120
    %v345 = vunpack.c.l.b16 %v121
    %v346 = vunpack.c.l.b16 %v122
    %v347 = vunpack.c.l.b16 %v123
    %v348 = vunpack.c.l.b16 %v124
    %v349 = vunpack.c.l.b16 %v125
    %v350 = vunpack.c.l.b16 %v126
    %v351 = vunpack.c.l.b16 %v127
    %v352 = vunpack.c.l.b16 %v128
    %v353 = vunpack.c.l.b16 %v129
    %v354 = vunpack.c.l.b16 %v130
    %v355 = vunpack.c.l.b16 %v131
    %v356 = vpack.c.b16 %v309, %v308
    %v357 = vpack.c.b16 %v311, %v310
    %v358 = vpack.c.b16 %v313, %v312
    %v359 = vpack.c.b16 %v315, %v314
    %v360 = vpack.c.b16 %v317, %v316
    %v361 = vpack.c.b16 %v319, %v318
    %v362 = vpack.c.b16 %v321, %v320
    %v363 = vpack.c.b16 %v323, %v322
    %v364 = vpack.c.b16 %v325, %v324
    %v365 = vpack.c.b16 %v327, %v326
    %v366 = vpack.c.b16 %v329, %v328
    %v367 = vpack.c.b16 %v331, %v330
    %v368 = vpack.c.b16 %v333, %v332
    %v369 = vpack.c.b16 %v335, %v334
    %v370 = vpack.c.b16 %v337, %v336
    %v371 = vpack.c.b16 %v339, %v338
    %v372 = vpack.c.b16 %v341, %v340
    %v373 = vpack.c.b16 %v343, %v342
    %v374 = vpack.c.b16 %v345, %v344
    %v375 = vpack.c.b16 %v347, %v346
    %v376 = vpack.c.b16 %v349, %v348
    %v377 = vpack.c.b16 %v351, %v350
    %v378 = vpack.c.b16 %v353, %v352
    %v379 = vpack.c.b16 %v355, %v354
    %404 = vmatprep.subr.bf16.mxu0 0
    %405 = vmatpush1.bf16.msra.mxu0 %v356
    %406 = vmatprep.subr.bf16.mxu0 0
    %407 = vmatpush1.bf16.msra.mxu0 %v357
    %408 = vmatprep.subr.bf16.mxu0 0
    %409 = vmatpush1.bf16.msra.mxu0 %v358
    %410 = vmatprep.subr.bf16.mxu0 0
    %411 = vmatpush1.bf16.msra.mxu0 %v359
    %412 = vmatprep.subr.bf16.mxu0 0
    %413 = vmatpush1.bf16.msra.mxu0 %v360
    %414 = vmatprep.subr.bf16.mxu0 0
    %415 = vmatpush1.bf16.msra.mxu0 %v361
    %416 = vmatprep.subr.bf16.mxu0 0
    %417 = vmatpush1.bf16.msra.mxu0 %v362
    %418 = vmatprep.subr.bf16.mxu0 0
    %419 = vmatpush1.bf16.msra.mxu0 %v363
    %420 = vmatprep.subr.bf16.mxu0 0
    %421 = vmatpush1.bf16.msra.mxu0 %v364
    %422 = vmatprep.subr.bf16.mxu0 0
    %423 = vmatpush1.bf16.msra.mxu0 %v365
    %424 = vmatprep.subr.bf16.mxu0 0
    %425 = vmatpush1.bf16.msra.mxu0 %v366
    %426 = vmatprep.subr.bf16.mxu0 0
    %427 = vmatpush1.bf16.msra.mxu0 %v367
    %428 = vmatprep.subr.bf16.mxu0 0
    %429 = vmatpush1.bf16.msra.mxu0 %v368
    %430 = vmatprep.subr.bf16.mxu0 0
    %431 = vmatpush1.bf16.msra.mxu0 %v369
    %432 = vmatprep.subr.bf16.mxu0 0
    %433 = vmatpush1.bf16.msra.mxu0 %v370
    %434 = vmatprep.subr.bf16.mxu0 0
    %435 = vmatpush1.bf16.msra.mxu0 %v371
    %436 = vmatprep.mubr.bf16.mxu0 %v213
    %437 = vmatmul.mubr.bf16.gmra.mrb[0].mxu0 %v212
    %v438 = vpop.f32.mrb[0].mxu0
    %v439 = vadd.f32 0.0, %v438
    %v440 = vpop.f32.mrb[0].mxu0
    %v441 = vpop.f32.mrb[0].mxu0
    %v442 = vadd.f32 0.0, %v441
    %v443 = vpop.f32.mrb[0].mxu0
    %444 = vmatprep.mubr.bf16.mxu0 %v216
    %445 = vmatmul.mubr.bf16.gmra.mrb[0].mxu0 %v215
    %v446 = vpop.f32.mrb[0].mxu0
    %v447 = vadd.f32 0.0, %v446
    %v448 = vpop.f32.mrb[0].mxu0
    %v449 = vpop.f32.mrb[0].mxu0
    %v450 = vadd.f32 0.0, %v449
    %v451 = vpop.f32.mrb[0].mxu0
    %452 = vmatprep.mubr.bf16.mxu0 %v219
    %453 = vmatmul.mubr.bf16.gmra.mrb[0].mxu0 %v218
    %v454 = vpop.f32.mrb[0].mxu0
    %v455 = vadd.f32 0.0, %v454
    %v456 = vpop.f32.mrb[0].mxu0
    %v457 = vpop.f32.mrb[0].mxu0
    %v458 = vadd.f32 0.0, %v457
    %v459 = vpop.f32.mrb[0].mxu0
    %460 = vmatprep.mubr.bf16.mxu0 %v222
    %461 = vmatmul.mubr.bf16.gmra.mrb[0].mxu0 %v221
    %v462 = vpop.f32.mrb[0].mxu0
    %v463 = vadd.f32 0.0, %v462
    %v464 = vpop.f32.mrb[0].mxu0
    %v465 = vpop.f32.mrb[0].mxu0
    %v466 = vadd.f32 0.0, %v465
    %v467 = vpop.f32.mrb[0].mxu0
    %468 = vmatprep.mubr.bf16.mxu0 %v225
    %469 = vmatmul.mubr.bf16.gmra.mrb[0].mxu0 %v224
    %v470 = vpop.f32.mrb[0].mxu0
    %v471 = vadd.f32 0.0, %v470
    %v472 = vpop.f32.mrb[0].mxu0
    %v473 = vpop.f32.mrb[0].mxu0
    %v474 = vadd.f32 0.0, %v473
    %v475 = vpop.f32.mrb[0].mxu0
    %476 = vmatprep.mubr.bf16.mxu0 %v228
    %477 = vmatmul.mubr.bf16.gmra.mrb[0].mxu0 %v227
    %v478 = vpop.f32.mrb[0].mxu0
    %v479 = vadd.f32 0.0, %v478
    %v480 = vpop.f32.mrb[0].mxu0
    %v481 = vpop.f32.mrb[0].mxu0
    %v482 = vadd.f32 0.0, %v481
    %v483 = vpop.f32.mrb[0].mxu0
    %484 = vmatprep.mubr.bf16.mxu0 %v231
    %485 = vmatmul.mubr.bf16.gmra.mrb[0].mxu0 %v230
    %v486 = vpop.f32.mrb[0].mxu0
    %v487 = vadd.f32 0.0, %v486
    %v488 = vpop.f32.mrb[0].mxu0
    %v489 = vpop.f32.mrb[0].mxu0
    %v490 = vadd.f32 0.0, %v489
    %v491 = vpop.f32.mrb[0].mxu0
    %492 = vmatprep.mubr.bf16.mxu0 %v234
    %493 = vmatmul.mubr.bf16.gmra.mrb[0].mxu0 %v233
    %v494 = vpop.f32.mrb[0].mxu0
    %v495 = vadd.f32 0.0, %v494
    %v496 = vpop.f32.mrb[0].mxu0
    %v497 = vpop.f32.mrb[0].mxu0
    %v498 = vadd.f32 0.0, %v497
    %v499 = vpop.f32.mrb[0].mxu0
    %500 = vdwg.mxu0
    %501 = vmatprep.subr.bf16.mxu0 0
    %502 = vmatpush1.bf16.msra.mxu0 %v372
    %503 = vmatprep.subr.bf16.mxu0 0
    %504 = vmatpush1.bf16.msra.mxu0 %v373
    %505 = vmatprep.subr.bf16.mxu0 0
    %506 = vmatpush1.bf16.msra.mxu0 %v374
    %507 = vmatprep.subr.bf16.mxu0 0
    %508 = vmatpush1.bf16.msra.mxu0 %v375
    %509 = vmatprep.subr.bf16.mxu0 0
    %510 = vmatpush1.bf16.msra.mxu0 %v376
    %511 = vmatprep.subr.bf16.mxu0 0
    %512 = vmatpush1.bf16.msra.mxu0 %v377
    %513 = vmatprep.subr.bf16.mxu0 0
    %514 = vmatpush1.bf16.msra.mxu0 %v378
    %515 = vmatprep.subr.bf16.mxu0 0
    %516 = vmatpush1.bf16.msra.mxu0 %v379
    %517 = vmatprep.subr.bf16.mxu0 0
    %518 = vmatpush1.bf16.msra.mxu0 0
    %519 = vmatprep.subr.bf16.mxu0 0
    %520 = vmatpush1.bf16.msra.mxu0 0
    %521 = vmatprep.subr.bf16.mxu0 0
    %522 = vmatpush1.bf16.msra.mxu0 0
    %523 = vmatprep.subr.bf16.mxu0 0
    %524 = vmatpush1.bf16.msra.mxu0 0
    %525 = vmatprep.subr.bf16.mxu0 0
    %526 = vmatpush1.bf16.msra.mxu0 0
    %527 = vmatprep.subr.bf16.mxu0 0
    %528 = vmatpush1.bf16.msra.mxu0 0
    %529 = vmatprep.subr.bf16.mxu0 0
    %530 = vmatpush1.bf16.msra.mxu0 0
    %531 = vmatprep.subr.bf16.mxu0 0
    %532 = vmatpush1.bf16.msra.mxu0 0
    %533 = vmatprep.mubr.bf16.mxu0 0
    %534 = vmatmul.mubr.bf16.gmra.mrb[0].mxu0 %v214
    %v535 = vpop.f32.mrb[0].mxu0
    %v536 = vadd.f32 %v439, %v535
    %v537 = vpop.f32.mrb[0].mxu0
    %v538 = vpop.f32.mrb[0].mxu0
    %v539 = vadd.f32 %v442, %v538
    %v540 = vpop.f32.mrb[0].mxu0
    %541 = vmatprep.mubr.bf16.mxu0 0
    %542 = vmatmul.mubr.bf16.gmra.mrb[0].mxu0 %v217
    %v543 = vpop.f32.mrb[0].mxu0
    %v544 = vadd.f32 %v447, %v543
    %v545 = vpop.f32.mrb[0].mxu0
    %v546 = vpop.f32.mrb[0].mxu0
    %v547 = vadd.f32 %v450, %v546
    %v548 = vpop.f32.mrb[0].mxu0
    %549 = vmatprep.mubr.bf16.mxu0 0
    %550 = vmatmul.mubr.bf16.gmra.mrb[0].mxu0 %v220
    %v551 = vpop.f32.mrb[0].mxu0
    %v552 = vadd.f32 %v455, %v551
    %v553 = vpop.f32.mrb[0].mxu0
    %v554 = vpop.f32.mrb[0].mxu0
    %v555 = vadd.f32 %v458, %v554
    %v556 = vpop.f32.mrb[0].mxu0
    %557 = vmatprep.mubr.bf16.mxu0 0
    %558 = vmatmul.mubr.bf16.gmra.mrb[0].mxu0 %v223
    %v559 = vpop.f32.mrb[0].mxu0
    %v560 = vadd.f32 %v463, %v559
    %v561 = vpop.f32.mrb[0].mxu0
    %v562 = vpop.f32.mrb[0].mxu0
    %v563 = vadd.f32 %v466, %v562
    %v564 = vpop.f32.mrb[0].mxu0
    %565 = vmatprep.mubr.bf16.mxu0 0
    %566 = vmatmul.mubr.bf16.gmra.mrb[0].mxu0 %v226
    %v567 = vpop.f32.mrb[0].mxu0
    %v568 = vadd.f32 %v471, %v567
    %v569 = vpop.f32.mrb[0].mxu0
    %v570 = vpop.f32.mrb[0].mxu0
    %v571 = vadd.f32 %v474, %v570
    %v572 = vpop.f32.mrb[0].mxu0
    %573 = vmatprep.mubr.bf16.mxu0 0
    %574 = vmatmul.mubr.bf16.gmra.mrb[0].mxu0 %v229
    %v575 = vpop.f32.mrb[0].mxu0
    %v576 = vadd.f32 %v479, %v575
    %v577 = vpop.f32.mrb[0].mxu0
    %v578 = vpop.f32.mrb[0].mxu0
    %v579 = vadd.f32 %v482, %v578
    %v580 = vpop.f32.mrb[0].mxu0
    %581 = vmatprep.mubr.bf16.mxu0 0
    %582 = vmatmul.mubr.bf16.gmra.mrb[0].mxu0 %v232
    %v583 = vpop.f32.mrb[0].mxu0
    %v584 = vadd.f32 %v487, %v583
    %v585 = vpop.f32.mrb[0].mxu0
    %v586 = vpop.f32.mrb[0].mxu0
    %v587 = vadd.f32 %v490, %v586
    %v588 = vpop.f32.mrb[0].mxu0
    %589 = vmatprep.mubr.bf16.mxu0 0
    %590 = vmatmul.mubr.bf16.gmra.mrb[0].mxu0 %v235
    %v591 = vpop.f32.mrb[0].mxu0
    %v592 = vadd.f32 %v495, %v591
    %v593 = vpop.f32.mrb[0].mxu0
    %v594 = vpop.f32.mrb[0].mxu0
    %v595 = vadd.f32 %v498, %v594
    %v596 = vpop.f32.mrb[0].mxu0
    %597 = vdwg.mxu0
    %v598 = vadd.f32 %v36, %v536
    %v599 = vadd.f32 %v37, %v539
    %v600 = vadd.f32 %v38, %v544
    %v601 = vadd.f32 %v39, %v547
    %v602 = vadd.f32 %v40, %v552
    %v603 = vadd.f32 %v41, %v555
    %v604 = vadd.f32 %v42, %v560
    %v605 = vadd.f32 %v43, %v563
    %v606 = vadd.f32 %v44, %v568
    %v607 = vadd.f32 %v45, %v571
    %v608 = vadd.f32 %v46, %v576
    %v609 = vadd.f32 %v47, %v579
    %v610 = vadd.f32 %v48, %v584
    %v611 = vadd.f32 %v49, %v587
    %v612 = vadd.f32 %v50, %v592
    %v613 = vadd.f32 %v51, %v595
    %614 = vst [vmem:[#allocation2] sm:$0xff] %v598
    %615 = vst [vmem:[#allocation2 + $0x8] sm:$0xff] %v599
    %616 = vst [vmem:[#allocation2 + $0x10] sm:$0xff] %v600
    %617 = vst [vmem:[#allocation2 + $0x18] sm:$0xff] %v601
    %618 = vst [vmem:[#allocation2 + $0x20] sm:$0xff] %v602
    %619 = vst [vmem:[#allocation2 + $0x28] sm:$0xff] %v603
    %620 = vst [vmem:[#allocation2 + $0x30] sm:$0xff] %v604
    %621 = vst [vmem:[#allocation2 + $0x38] sm:$0xff] %v605
    %622 = vst [vmem:[#allocation2 + $0x40] sm:$0xff] %v606
    %623 = vst [vmem:[#allocation2 + $0x48] sm:$0xff] %v607
    %624 = vst [vmem:[#allocation2 + $0x50] sm:$0xff] %v608
    %625 = vst [vmem:[#allocation2 + $0x58] sm:$0xff] %v609
    %626 = vst [vmem:[#allocation2 + $0x60] sm:$0xff] %v610
    %627 = vst [vmem:[#allocation2 + $0x68] sm:$0xff] %v611
    %628 = vst [vmem:[#allocation2 + $0x70] sm:$0xff] %v612
    %629 = vst [vmem:[#allocation2 + $0x78] sm:$0xff] %v613
    // Predicated region
    $region18: #{module_init_forward.3} parent=1 // pred_check
      %p630 = pneg %p16
    $region19: #{module_init_forward.3} parent=1 // pred_check_branch
      %632 = sbr.rel (%p630) target = $region21
    $region20: #{module_init_forward.3} parent=1 // pred_region
      %v633 = vld [vmem:[#allocation2] sm:$0xff]
      %v634 = vld [vmem:[#allocation2 + $0x8] sm:$0xff]
      %v635 = vld [vmem:[#allocation2 + $0x10] sm:$0xff]
      %v636 = vld [vmem:[#allocation2 + $0x18] sm:$0xff]
      %v637 = vld [vmem:[#allocation2 + $0x20] sm:$0xff]
      %v638 = vld [vmem:[#allocation2 + $0x28] sm:$0xff]
      %v639 = vld [vmem:[#allocation2 + $0x30] sm:$0xff]
      %v640 = vld [vmem:[#allocation2 + $0x38] sm:$0xff]
      %v641 = vld [vmem:[#allocation2 + $0x40] sm:$0xff]
      %v642 = vld [vmem:[#allocation2 + $0x48] sm:$0xff]
      %v643 = vld [vmem:[#allocation2 + $0x50] sm:$0xff]
      %v644 = vld [vmem:[#allocation2 + $0x58] sm:$0xff]
      %v645 = vld [vmem:[#allocation2 + $0x60] sm:$0xff]
      %v646 = vld [vmem:[#allocation2 + $0x68] sm:$0xff]
      %v647 = vld [vmem:[#allocation2 + $0x70] sm:$0xff]
      %v648 = vld [vmem:[#allocation2 + $0x78] sm:$0xff]
      %v649 = vld [vmem:[%s2] sm:$0x1]
      %v651 = vlaneseq
      %v652 = vshrl.u32 %v651, 7
      %v653 = vsub.s32 0, %v652
      %v654 = vrot.slane %v649, %v653
      %v656 = vadd.f32 %v633, %v654
      %v657 = vadd.f32 %v634, %v654
      %v658 = vadd.f32 %v635, %v654
      %v659 = vadd.f32 %v636, %v654
      %v660 = vadd.f32 %v637, %v654
      %v661 = vadd.f32 %v638, %v654
      %v662 = vadd.f32 %v639, %v654
      %v663 = vadd.f32 %v640, %v654
      %v664 = vadd.f32 %v641, %v654
      %v665 = vadd.f32 %v642, %v654
      %v666 = vadd.f32 %v643, %v654
      %v667 = vadd.f32 %v644, %v654
      %v668 = vadd.f32 %v645, %v654
      %v669 = vadd.f32 %v646, %v654
      %v670 = vadd.f32 %v647, %v654
      %v671 = vadd.f32 %v648, %v654
      %v672 = vmax.f32 %v656, 0.0
      %v673 = vmax.f32 %v657, 0.0
      %v674 = vmax.f32 %v658, 0.0
      %v675 = vmax.f32 %v659, 0.0
      %v676 = vmax.f32 %v660, 0.0
      %v677 = vmax.f32 %v661, 0.0
      %v678 = vmax.f32 %v662, 0.0
      %v679 = vmax.f32 %v663, 0.0
      %v680 = vmax.f32 %v664, 0.0
      %v681 = vmax.f32 %v665, 0.0
      %v682 = vmax.f32 %v666, 0.0
      %v683 = vmax.f32 %v667, 0.0
      %v684 = vmax.f32 %v668, 0.0
      %v685 = vmax.f32 %v669, 0.0
      %v686 = vmax.f32 %v670, 0.0
      %v687 = vmax.f32 %v671, 0.0
      %688 = vst [vmem:[#allocation3] sm:$0xff] %v672
      %689 = vst [vmem:[#allocation3 + $0x8] sm:$0xff] %v673
      %690 = vst [vmem:[#allocation3 + $0x10] sm:$0xff] %v674
      %691 = vst [vmem:[#allocation3 + $0x18] sm:$0xff] %v675
      %692 = vst [vmem:[#allocation3 + $0x20] sm:$0xff] %v676
      %693 = vst [vmem:[#allocation3 + $0x28] sm:$0xff] %v677
      %694 = vst [vmem:[#allocation3 + $0x30] sm:$0xff] %v678
      %695 = vst [vmem:[#allocation3 + $0x38] sm:$0xff] %v679
      %696 = vst [vmem:[#allocation3 + $0x40] sm:$0xff] %v680
      %697 = vst [vmem:[#allocation3 + $0x48] sm:$0xff] %v681
      %698 = vst [vmem:[#allocation3 + $0x50] sm:$0xff] %v682
      %699 = vst [vmem:[#allocation3 + $0x58] sm:$0xff] %v683
      %700 = vst [vmem:[#allocation3 + $0x60] sm:$0xff] %v684
      %701 = vst [vmem:[#allocation3 + $0x68] sm:$0xff] %v685
      %702 = vst [vmem:[#allocation3 + $0x70] sm:$0xff] %v686
      %703 = vst [vmem:[#allocation3 + $0x78] sm:$0xff] %v687
    $region21: #{module_init_forward.3} parent=1 // pred_fallthru
      _
    // Predicated region
    $region22: #{module_init_forward.3} parent=1 // pred_check
      _
    $region23: #{module_init_forward.3} parent=1 // pred_check_branch
      %705 = sbr.rel (0) target = $region25
    $region24: #{module_init_forward.3} parent=1 // pred_region
      %s707 = ssub.s32 2048, 2048
      %708 = vsyncadd [#allocation4], %s707
      %s709 = sshll.u32 [#allocation3], 4
      %s710 = int_to_ptr.vmem [resolvable:$true] %s709
      %715 = dma.vmem_to_hbm [thread:$0]  %s710, 2048, %s3, [#allocation4], 128, 128, 8
    $region25: #{module_init_forward.3} parent=1 // pred_fallthru
      _
    // Predicated region
    $region26: #{module_init_forward.3} parent=1 // pred_check
      _
    $region27: #{module_init_forward.3} parent=1 // pred_check_branch
      %717 = sbr.rel (0) target = $region29
    $region28: #{module_init_forward.3} parent=1 // pred_region
      %718 = dma.done [#allocation4], 2048
    $region29: #{module_init_forward.3} parent=1 // pred_fallthru
      _
    %719 = vsyncpa [#allocation4], 1

</llo_original>
